<compile_context>
chip_gen: v7x
topology: tpu7x:2x2x1
jax: 0.10.0
libtpu: 0.0.40
codegen_flags: <defaults>
</compile_context>

<pallas_src>
import jax
import jax.numpy as jnp
from jax.experimental import pallas as pl
from jax.experimental.pallas import tpu as pltpu

_LANE = 128
_MAX_COLS = 4096
_SMALL_BYTES = 8 << 20            # total (2 in + 1 out) footprint for gridless path
_TARGET_BLOCK_BYTES = 8 << 20     # ~8 MiB per-array block in the tiled path
_VMEM_LIMIT_BYTES = 56 << 20      # 3 bufs x 2-deep x 8 MiB = 48 MiB (+ headroom) < 64 MiB (v7x)
_MIN_GRID_STEPS = 4               # keep v7x's two TensorCores busy + double-buffer overlap


def _mse_none_kernel(pred_ref, true_ref, out_ref):
    # Elementwise squared error on the whole VMEM tile.
    diff = pred_ref[...] - true_ref[...]
    out_ref[...] = diff * diff


def _sublane_multiple(dtype) -> int:
    # Sub-32-bit dtypes pack along sublanes: f32 -> 8, bf16/f16 -> 16, int8/fp8 -> 32.
    itemsize = jnp.dtype(dtype).itemsize
    return 8 * max(1, 4 // max(1, itemsize))


def _round_up(x: int, m: int) -> int:
    return -(-x // m) * m


def _choose_cols(n: int) -> int:
    """Largest power-of-two divisor of n (capped at 4096), preferring >= 8 rows.

    Returns 0 if n is not a multiple of 128 (caller takes the ragged path)."""
    cols = min(n & (-n), _MAX_COLS)   # largest power of two dividing n
    if cols < _LANE:
        return 0
    while cols > _LANE and (n // cols) < 8:
        cols //= 2
    return cols


def _mse_2d(pred2d: jax.Array, true2d: jax.Array) -> jax.Array:
    """Squared error on a 2D slab: gridless if it fits comfortably in VMEM,
    otherwise row-tiled with ~8 MiB blocks ('parallel' grid axis)."""
    rows, cols = pred2d.shape
    dtype = pred2d.dtype
    itemsize = jnp.dtype(dtype).itemsize
    slab_bytes = rows * cols * itemsize

    if 3 * slab_bytes <= _SMALL_BYTES:
        # Tiny/medium problem: one gridless call, whole slab resident in VMEM,
        # zero grid/pipeline scaffolding.  block == full array dims, so the
        # (8, 128) divisibility rule does not apply here.
        return pl.pallas_call(
            _mse_none_kernel,
            out_shape=jax.ShapeDtypeStruct((rows, cols), dtype),
            in_specs=[pl.BlockSpec(memory_space=pltpu.MemorySpace.VMEM),
                      pl.BlockSpec(memory_space=pltpu.MemorySpace.VMEM)],
            out_specs=pl.BlockSpec(memory_space=pltpu.MemorySpace.VMEM),
        )(pred2d, true2d)

    # Tiled path (cols is a multiple of 128 by construction in the caller).
    sub = _sublane_multiple(dtype)
    block_rows = max(sub, (_TARGET_BLOCK_BYTES // (cols * itemsize)) // sub * sub)
    # Guarantee >= _MIN_GRID_STEPS grid steps: avoids a 1-step grid that would
    # idle one v7x TensorCore and kill double-buffer overlap on medium slabs.
    block_rows = min(block_rows,
                     max(sub, _round_up(-(-rows // _MIN_GRID_STEPS), sub)))
    grid = (-(-rows // block_rows),)   # cdiv; a ragged last block is masked by Pallas
    return pl.pallas_call(
        _mse_none_kernel,
        out_shape=jax.ShapeDtypeStruct((rows, cols), dtype),
        grid=grid,
        in_specs=[pl.BlockSpec((block_rows, cols), lambda i: (i, 0)),
                  pl.BlockSpec((block_rows, cols), lambda i: (i, 0))],
        out_specs=pl.BlockSpec((block_rows, cols), lambda i: (i, 0)),
        compiler_params=pltpu.CompilerParams(
            dimension_semantics=("parallel",),
            vmem_limit_bytes=_VMEM_LIMIT_BYTES,
        ),
    )(pred2d, true2d)


def mse_loss_none(pred: jax.Array, y_true: jax.Array) -> jax.Array:
    assert pred.shape == y_true.shape, "MSELoss(none) requires matching shapes"
    orig_shape = pred.shape
    n = pred.size
    if n == 0:
        return jnp.zeros(orig_shape, pred.dtype)

    cols = _choose_cols(n)
    if cols:
        # Common case (n % 128 == 0): pure metadata reshape in and out,
        # no pad, no slice -- no extra HBM passes.
        out2d = _mse_2d(pred.reshape(n // cols, cols),
                        y_true.reshape(n // cols, cols))
        return out2d.reshape(orig_shape)

    # n is not a multiple of 128 (rare for ML tensors).
    flat_p = pred.reshape(-1)
    flat_t = y_true.reshape(-1)
    if n <= (1 << 16):
        # Tiny ragged input: single gridless call on a (1, n) full block.
        return _mse_2d(flat_p.reshape(1, n),
                       flat_t.reshape(1, n)).reshape(orig_shape)

    # Large ragged input: run the kernel on the 128-aligned prefix and compute
    # the (< 128 element) tail with plain XLA.
    n_main = (n // _LANE) * _LANE
    main_cols = _choose_cols(n_main)
    main_p = jax.lax.slice(flat_p, (0,), (n_main,)).reshape(n_main // main_cols, main_cols)
    main_t = jax.lax.slice(flat_t, (0,), (n_main,)).reshape(n_main // main_cols, main_cols)
    main_out = _mse_2d(main_p, main_t).reshape(-1)
    tail_diff = flat_p[n_main:] - flat_t[n_main:]
    return jnp.concatenate([main_out, tail_diff * tail_diff]).reshape(orig_shape)


if __name__ == "__main__":
    key = jax.random.PRNGKey(0)
    k1, k2, k3, k4 = jax.random.split(key, 4)

    f = jax.jit(mse_loss_none)

    # Small NCHW shapes consistent with the module's generic elementwise forward.
    pred = jax.random.normal(k1, (2, 4, 16, 16), dtype=jnp.float32)
    y_true = jax.random.normal(k2, (2, 4, 16, 16), dtype=jnp.float32)
    out = jax.block_until_ready(f(pred, y_true))
    ref = (pred - y_true) ** 2
    assert out.shape == pred.shape and out.dtype == pred.dtype
    assert jnp.allclose(out, ref, atol=1e-6, rtol=1e-6)

    # Exercise the tiled (grid) path once as well.
    pred_big = jax.random.normal(k3, (8, 16, 128, 64), dtype=jnp.float32)
    true_big = jax.random.normal(k4, (8, 16, 128, 64), dtype=jnp.float32)
    out_big = jax.block_until_ready(f(pred_big, true_big))
    assert jnp.allclose(out_big, (pred_big - true_big) ** 2, atol=1e-6, rtol=1e-6)

    # Exercise the ragged (n % 128 != 0) small path.
    pred_r = jax.random.normal(k1, (3, 5, 7), dtype=jnp.float32)
    true_r = jax.random.normal(k2, (3, 5, 7), dtype=jnp.float32)
    out_r = jax.block_until_ready(f(pred_r, true_r))
    assert jnp.allclose(out_r, (pred_r - true_r) ** 2, atol=1e-6, rtol=1e-6)

    print("KERNEL_OK")
</pallas_src>

<mosaic_0001>
module attributes {stable_mosaic.version = 11 : i64} {
  func.func @_mse_none_kernel(%arg0: memref<8x256xf32, #tpu.memory_space<vmem>>, %arg1: memref<8x256xf32, #tpu.memory_space<vmem>>, %arg2: memref<8x256xf32, #tpu.memory_space<vmem>>) attributes {dimension_semantics = [], scalar_prefetch = 0 : i64, scratch_operands = 0 : i64, tpu.core_type = #tpu.core_type<tc>} {
    %c0 = arith.constant 0 : index
    %c0_0 = arith.constant 0 : index
    %0 = vector.load %arg0[%c0, %c0_0] : memref<8x256xf32, #tpu.memory_space<vmem>>, vector<8x256xf32>
    %c0_1 = arith.constant 0 : index
    %c0_2 = arith.constant 0 : index
    %1 = vector.load %arg1[%c0_1, %c0_2] : memref<8x256xf32, #tpu.memory_space<vmem>>, vector<8x256xf32>
    %2 = arith.subf %0, %1 : vector<8x256xf32>
    %3 = arith.mulf %2, %2 : vector<8x256xf32>
    %c0_3 = arith.constant 0 : index
    %c0_4 = arith.constant 0 : index
    %4 = vector.load %arg2[%c0_3, %c0_4] : memref<8x256xf32, #tpu.memory_space<vmem>>, vector<8x256xf32>
    tpu.vector_store %arg2[%c0_3, %c0_4], %3 {strides = array<i32>} : memref<8x256xf32, #tpu.memory_space<vmem>>, vector<8x256xf32>,
    return
  }
}

</mosaic_0001>

<llo_original>
// kernel: mse_loss_none.1
$region0: #{mse_loss_none.1}
  #allocation0 [shape = 'u32[]', space=smem, size = 0x4, offset = 0x4, fixed_abs, tag = 'smem constant byte address 0x4 - core index']
  #allocation1 [shape = 'u32[144,128]{1,0:T(1,128)}', space=vmem, size = 0x12000, scoped, tag = 'internal scratch']
  %s0 = inlined_call_operand.vmem [shape: f32[8,256], index: 0, kind: input, shape index: {}]
  %s1 = inlined_call_operand.vmem [shape: f32[8,256], index: 1, kind: input, shape index: {}]
  %s2 = inlined_call_operand.vmem [shape: f32[8,256], index: 2, kind: output, shape index: {}]
  %s3 = sld [smem:[#allocation0]]
  $region18: #{mse_loss_none.1} parent=0
    _
  %s5 = ssub.s32 1, %s3
  %s6 = scalar_select 0, %s5, %s3
  // Predicated region
  $region2: #{mse_loss_none.1} parent=0 // pred_check
    _
  $region3: #{mse_loss_none.1} parent=0 // pred_check_branch
    %8 = sbr.rel (0) target = $region5
  $region4: #{mse_loss_none.1} parent=0 // pred_region
    _
  $region5: #{mse_loss_none.1} parent=0 // pred_fallthru
    _
  // Predicated region
  $region6: #{mse_loss_none.1} parent=0 // pred_check
    _
  $region7: #{mse_loss_none.1} parent=0 // pred_check_branch
    %10 = sbr.rel (0) target = $region9
  $region8: #{mse_loss_none.1} parent=0 // pred_region
    _
  $region9: #{mse_loss_none.1} parent=0 // pred_fallthru
    _
  %v11 = vld [vmem:[%s0] sm:$0xff]
  %v12 = vld [vmem:[%s0 + $0x8] sm:$0xff]
  %v13 = vld [vmem:[%s1] sm:$0xff]
  %v14 = vld [vmem:[%s1 + $0x8] sm:$0xff]
  %v15 = vsub.f32 %v11, %v13
  %v16 = vsub.f32 %v12, %v14
  %v17 = vmul.f32 %v15, %v15
  %v18 = vmul.f32 %v16, %v16
  %19 = vst [vmem:[%s2] sm:$0xff] %v17
  %20 = vst [vmem:[%s2 + $0x8] sm:$0xff] %v18
  // Predicated region
  $region10: #{mse_loss_none.1} parent=0 // pred_check
    _
  $region11: #{mse_loss_none.1} parent=0 // pred_check_branch
    %22 = sbr.rel (0) target = $region13
  $region12: #{mse_loss_none.1} parent=0 // pred_region
    _
  $region13: #{mse_loss_none.1} parent=0 // pred_fallthru
    _
  // Predicated region
  $region14: #{mse_loss_none.1} parent=0 // pred_check
    _
  $region15: #{mse_loss_none.1} parent=0 // pred_check_branch
    %24 = sbr.rel (0) target = $region17
  $region16: #{mse_loss_none.1} parent=0 // pred_region
    _
  $region17: #{mse_loss_none.1} parent=0 // pred_fallthru
    _

</llo_original>
